<compile_context>
chip_gen: v7x
topology: tpu7x:2x2x1
jax: 0.10.0
libtpu: 0.0.40
codegen_flags: <defaults>
</compile_context>

<pallas_src>
import jax
import jax.numpy as jnp
from jax.experimental import pallas as pl
from jax.experimental.pallas import tpu as pltpu

BATCH_SIZE = 128      # hard-coded in the PyTorch module's .view()
HIDDEN_SIZE = 50
OUT_FEATURES = 784    # 28 * 28


def _decoder_kernel(x_ref, w_ref, b_ref, o_ref):
    # x_ref: (B, 50) f32, w_ref: (50, 784) f32, b_ref: (1, 784) f32,
    # o_ref: (B, 784) f32
    y = jnp.dot(x_ref[...], w_ref[...],
                preferred_element_type=jnp.float32)      # MXU, f32 accumulate
    y = y + b_ref[...]                                   # bias (VPU, f32)
    # sigmoid(y) == 0.5 * tanh(0.5 * y) + 0.5 : single EUP transcendental
    o_ref[...] = 0.5 * jnp.tanh(0.5 * y) + 0.5


def decoder_forward_flat(x, w, b):
    """x: (B, 50) f32; w: (50, 784) f32; b: (1, 784) f32.
    Returns lane-dense (B, 784) f32 = sigmoid(x @ W + b)."""
    B = x.shape[0]
    cost = pl.CostEstimate(
        flops=2 * B * HIDDEN_SIZE * OUT_FEATURES,
        transcendentals=B * OUT_FEATURES,
        bytes_accessed=4 * (B * HIDDEN_SIZE
                            + HIDDEN_SIZE * OUT_FEATURES
                            + OUT_FEATURES
                            + B * OUT_FEATURES),
    )
    return pl.pallas_call(
        _decoder_kernel,
        out_shape=jax.ShapeDtypeStruct((B, OUT_FEATURES), jnp.float32),
        grid=(1,),
        in_specs=[
            pl.BlockSpec((B, HIDDEN_SIZE), lambda i: (0, 0)),
            pl.BlockSpec((HIDDEN_SIZE, OUT_FEATURES), lambda i: (0, 0)),
            pl.BlockSpec((1, OUT_FEATURES), lambda i: (0, 0)),
        ],
        out_specs=pl.BlockSpec((B, OUT_FEATURES), lambda i: (0, 0)),
        compiler_params=pltpu.CompilerParams(
            dimension_semantics=("arbitrary",)),
        cost_estimate=cost,
    )(x, w, b)


def decoder_forward(x, w, b):
    """Matches torch Decoder.forward: the trailing-1 .view(B, 28, 28, 1) is a
    pure logical reshape done outside the kernel."""
    B = x.shape[0]
    return decoder_forward_flat(x, w, b).reshape(B, 28, 28, 1)


def init_params(key):
    """torch nn.Linear default init: U(-1/sqrt(fan_in), 1/sqrt(fan_in))."""
    kw, kb = jax.random.split(key)
    bound = 1.0 / jnp.sqrt(jnp.float32(HIDDEN_SIZE))
    # stored as (hidden, out) == transpose of torch's (out, hidden)
    w = jax.random.uniform(kw, (HIDDEN_SIZE, OUT_FEATURES),
                           minval=-bound, maxval=bound, dtype=jnp.float32)
    b = jax.random.uniform(kb, (1, OUT_FEATURES),
                           minval=-bound, maxval=bound, dtype=jnp.float32)
    return w, b


if __name__ == "__main__":
    key = jax.random.PRNGKey(0)
    kx, kp = jax.random.split(key)

    x = jax.random.normal(kx, (BATCH_SIZE, HIDDEN_SIZE), dtype=jnp.float32)
    w, b = init_params(kp)

    out = decoder_forward(x, w, b)
    out = jax.block_until_ready(out)
    assert out.shape == (BATCH_SIZE, 28, 28, 1)

    # Pure-JAX reference (f32 linear + exp-based sigmoid).  Output is bounded
    # in [0, 1]; tolerance covers MXU f32 pass decomposition and the
    # tanh-based sigmoid form.
    ref = jax.nn.sigmoid(x @ w + b).reshape(BATCH_SIZE, 28, 28, 1)
    assert jnp.allclose(out, ref, atol=2e-3, rtol=2e-3), (
        float(jnp.max(jnp.abs(out - ref))))

    print("KERNEL_OK")
</pallas_src>

<mosaic_0001>
module attributes {stable_mosaic.version = 11 : i64} {
  func.func @_decoder_kernel(%arg0: i32, %arg1: memref<128x50xf32, #tpu.memory_space<vmem>>, %arg2: memref<50x784xf32, #tpu.memory_space<vmem>>, %arg3: memref<1x784xf32, #tpu.memory_space<vmem>>, %arg4: memref<128x784xf32, #tpu.memory_space<vmem>>) attributes {dimension_semantics = [#tpu.dimension_semantics<arbitrary>], iteration_bounds = array<i64: 1>, scalar_prefetch = 0 : i64, scratch_operands = 0 : i64, tpu.core_type = #tpu.core_type<tc>, window_params = [{pipeline_mode = #tpu.pipeline_mode<synchronous>, transform_indices = @transform_0, window_bounds = array<i64: 128, 50>}, {pipeline_mode = #tpu.pipeline_mode<synchronous>, transform_indices = @transform_1, window_bounds = array<i64: 50, 784>}, {pipeline_mode = #tpu.pipeline_mode<synchronous>, transform_indices = @transform_2, window_bounds = array<i64: 1, 784>}, {pipeline_mode = #tpu.pipeline_mode<synchronous>, transform_indices = @transform_3, window_bounds = array<i64: 128, 784>}]} {
    %c0 = arith.constant 0 : index
    %c0_0 = arith.constant 0 : index
    %0 = vector.load %arg1[%c0, %c0_0] : memref<128x50xf32, #tpu.memory_space<vmem>>, vector<128x50xf32>
    %c0_1 = arith.constant 0 : index
    %c0_2 = arith.constant 0 : index
    %1 = vector.load %arg2[%c0_1, %c0_2] : memref<50x784xf32, #tpu.memory_space<vmem>>, vector<50x784xf32>
    %cst = arith.constant dense<0.000000e+00> : vector<128x784xf32>
    %2 = tpu.matmul %0, %1, %cst {dimension_numbers = #tpu.dot_dimension_numbers<[1], [0], [0], [1], [0, 0, 1, 1], [], []>} : vector<128x50xf32>, vector<50x784xf32>, vector<128x784xf32> -> vector<128x784xf32>
    %c0_3 = arith.constant 0 : index
    %c0_4 = arith.constant 0 : index
    %3 = vector.load %arg3[%c0_3, %c0_4] : memref<1x784xf32, #tpu.memory_space<vmem>>, vector<1x784xf32>
    %4 = vector.broadcast %3 : vector<1x784xf32> to vector<128x784xf32>
    %5 = arith.addf %2, %4 : vector<128x784xf32>
    %cst_5 = arith.constant 5.000000e-01 : f32
    %6 = vector.broadcast %cst_5 : f32 to vector<128x784xf32>
    %7 = arith.mulf %6, %5 : vector<128x784xf32>
    %8 = math.tanh %7 : vector<128x784xf32>
    %cst_6 = arith.constant 5.000000e-01 : f32
    %9 = vector.broadcast %cst_6 : f32 to vector<128x784xf32>
    %10 = arith.mulf %9, %8 : vector<128x784xf32>
    %cst_7 = arith.constant 5.000000e-01 : f32
    %11 = vector.broadcast %cst_7 : f32 to vector<128x784xf32>
    %12 = arith.addf %10, %11 : vector<128x784xf32>
    %c0_8 = arith.constant 0 : index
    %c0_9 = arith.constant 0 : index
    %13 = vector.load %arg4[%c0_8, %c0_9] : memref<128x784xf32, #tpu.memory_space<vmem>>, vector<128x784xf32>
    tpu.vector_store %arg4[%c0_8, %c0_9], %12 {strides = array<i32>} : memref<128x784xf32, #tpu.memory_space<vmem>>, vector<128x784xf32>,
    return
  }
  func.func @transform_0(%arg0: i32) -> (i32, i32) {
    %c0_i32 = arith.constant 0 : i32
    %c0_i32_0 = arith.constant 0 : i32
    %c0_i32_1 = arith.constant 0 : i32
    return %c0_i32, %c0_i32_0 : i32, i32
  }
  func.func @transform_1(%arg0: i32) -> (i32, i32) {
    %c0_i32 = arith.constant 0 : i32
    %c0_i32_0 = arith.constant 0 : i32
    %c0_i32_1 = arith.constant 0 : i32
    return %c0_i32, %c0_i32_0 : i32, i32
  }
  func.func @transform_2(%arg0: i32) -> (i32, i32) {
    %c0_i32 = arith.constant 0 : i32
    %c0_i32_0 = arith.constant 0 : i32
    %c0_i32_1 = arith.constant 0 : i32
    return %c0_i32, %c0_i32_0 : i32, i32
  }
  func.func @transform_3(%arg0: i32) -> (i32, i32) {
    %c0_i32 = arith.constant 0 : i32
    %c0_i32_0 = arith.constant 0 : i32
    %c0_i32_1 = arith.constant 0 : i32
    return %c0_i32, %c0_i32_0 : i32, i32
  }
}

</mosaic_0001>

<llo_original>
// kernel: tpu_custom_call.1
$region0: #{tpu_custom_call.1}
  #allocation0 [shape = 'u32[]', space=smem, size = 0x4, offset = 0x4, fixed_abs, tag = 'smem constant byte address 0x4 - core index']
  #allocation1 [shape = 'u32[144,128]{1,0:T(1,128)}', space=vmem, size = 0x12000, scoped, tag = 'internal scratch']
  %s0 = inlined_call_operand.vmem [shape: f32[128,50], index: 0, kind: input, shape index: {}]
  %s1 = inlined_call_operand.hbm [shape: f32[50,784], index: 1, kind: input, shape index: {}]
  %s2 = inlined_call_operand.vmem [shape: f32[1,784], index: 2, kind: input, shape index: {}]
  %s3 = inlined_call_operand.vmem [shape: f32[128,784], index: 3, kind: output, shape index: {}]
  %s4 = sld [smem:[#allocation0]]
  $region26: #{tpu_custom_call.1} parent=0
    _
  %s6 = ssub.s32 1, %s4
  %s7 = scalar_select 0, %s6, %s4
  $region1: #{tpu_custom_call.1} parent=0
    #allocation2 [shape = 'u8[200704]{0}', space=vmem, size = 0x31000, scoped, tag = 'input window, operand 1, single buffered']
    #allocation3 [shape = 's32[1]{0}', space=sflag, size = 0x4, scoped, tag = 'scoped memory for tpu_custom_call.1']
    %8 = vsyncpa [#allocation3], 0
    // Predicated region
    $region2: #{tpu_custom_call.1} parent=1 // pred_check
      _
    $region3: #{tpu_custom_call.1} parent=1 // pred_check_branch
      %10 = sbr.rel (0) target = $region5
    $region4: #{tpu_custom_call.1} parent=1 // pred_region
      _
    $region5: #{tpu_custom_call.1} parent=1 // pred_fallthru
      _
    // Predicated region
    $region6: #{tpu_custom_call.1} parent=1 // pred_check
      _
    $region7: #{tpu_custom_call.1} parent=1 // pred_check_branch
      %12 = sbr.rel (0) target = $region9
    $region8: #{tpu_custom_call.1} parent=1 // pred_region
      %s14 = ssub.s32 6272, 6272
      %15 = vsyncadd [#allocation3], %s14
      %s16 = sshll.u32 [#allocation2], 4
      %s17 = int_to_ptr.vmem [resolvable:$true] %s16
      %22 = dma.hbm_to_vmem [thread:$0]  %s1, 6272, %s17, [#allocation3], 896, 896, 56
    $region9: #{tpu_custom_call.1} parent=1 // pred_fallthru
      _
    // Predicated region
    $region10: #{tpu_custom_call.1} parent=1 // pred_check
      _
    $region11: #{tpu_custom_call.1} parent=1 // pred_check_branch
      %24 = sbr.rel (0) target = $region13
    $region12: #{tpu_custom_call.1} parent=1 // pred_region
      _
    $region13: #{tpu_custom_call.1} parent=1 // pred_fallthru
      _
    // Predicated region
    $region14: #{tpu_custom_call.1} parent=1 // pred_check
      _
    $region15: #{tpu_custom_call.1} parent=1 // pred_check_branch
      %26 = sbr.rel (0) target = $region17
    $region16: #{tpu_custom_call.1} parent=1 // pred_region
      %27 = dma.done [#allocation3], 6272
    $region17: #{tpu_custom_call.1} parent=1 // pred_fallthru
      _
    %v28 = vld [vmem:[%s0] sm:$0xff]
    %v29 = vld [vmem:[%s0 + $0x8] sm:$0xff]
    %v30 = vld [vmem:[%s0 + $0x10] sm:$0xff]
    %v31 = vld [vmem:[%s0 + $0x18] sm:$0xff]
    %v32 = vld [vmem:[%s0 + $0x20] sm:$0xff]
    %v33 = vld [vmem:[%s0 + $0x28] sm:$0xff]
    %v34 = vld [vmem:[%s0 + $0x30] sm:$0xff]
    %v35 = vld [vmem:[%s0 + $0x38] sm:$0xff]
    %v36 = vld [vmem:[%s0 + $0x40] sm:$0xff]
    %v37 = vld [vmem:[%s0 + $0x48] sm:$0xff]
    %v38 = vld [vmem:[%s0 + $0x50] sm:$0xff]
    %v39 = vld [vmem:[%s0 + $0x58] sm:$0xff]
    %v40 = vld [vmem:[%s0 + $0x60] sm:$0xff]
    %v41 = vld [vmem:[%s0 + $0x68] sm:$0xff]
    %v42 = vld [vmem:[%s0 + $0x70] sm:$0xff]
    %v43 = vld [vmem:[%s0 + $0x78] sm:$0xff]
    %v44 = vld [vmem:[#allocation2] sm:$0xff]
    %v45 = vld [vmem:[#allocation2 + $0x8] sm:$0xff]
    %v46 = vld [vmem:[#allocation2 + $0x10] sm:$0xff]
    %v47 = vld [vmem:[#allocation2 + $0x18] sm:$0xff]
    %v48 = vld [vmem:[#allocation2 + $0x20] sm:$0xff]
    %v49 = vld [vmem:[#allocation2 + $0x28] sm:$0xff]
    %v50 = vld [vmem:[#allocation2 + $0x30] sm:$0xff]
    %v51 = vld [vmem:[#allocation2 + $0x38] sm:$0xff]
    %v52 = vld [vmem:[#allocation2 + $0x40] sm:$0xff]
    %v53 = vld [vmem:[#allocation2 + $0x48] sm:$0xff]
    %v54 = vld [vmem:[#allocation2 + $0x50] sm:$0xff]
    %v55 = vld [vmem:[#allocation2 + $0x58] sm:$0xff]
    %v56 = vld [vmem:[#allocation2 + $0x60] sm:$0xff]
    %v57 = vld [vmem:[#allocation2 + $0x68] sm:$0xff]
    %v58 = vld [vmem:[#allocation2 + $0x70] sm:$0xff]
    %v59 = vld [vmem:[#allocation2 + $0x78] sm:$0xff]
    %v60 = vld [vmem:[#allocation2 + $0x80] sm:$0xff]
    %v61 = vld [vmem:[#allocation2 + $0x88] sm:$0xff]
    %v62 = vld [vmem:[#allocation2 + $0x90] sm:$0xff]
    %v63 = vld [vmem:[#allocation2 + $0x98] sm:$0xff]
    %v64 = vld [vmem:[#allocation2 + $0xa0] sm:$0xff]
    %v65 = vld [vmem:[#allocation2 + $0xa8] sm:$0xff]
    %v66 = vld [vmem:[#allocation2 + $0xb0] sm:$0xff]
    %v67 = vld [vmem:[#allocation2 + $0xb8] sm:$0xff]
    %v68 = vld [vmem:[#allocation2 + $0xc0] sm:$0xff]
    %v69 = vld [vmem:[#allocation2 + $0xc8] sm:$0xff]
    %v70 = vld [vmem:[#allocation2 + $0xd0] sm:$0xff]
    %v71 = vld [vmem:[#allocation2 + $0xd8] sm:$0xff]
    %v72 = vld [vmem:[#allocation2 + $0xe0] sm:$0xff]
    %v73 = vld [vmem:[#allocation2 + $0xe8] sm:$0xff]
    %v74 = vld [vmem:[#allocation2 + $0xf0] sm:$0xff]
    %v75 = vld [vmem:[#allocation2 + $0xf8] sm:$0xff]
    %v76 = vld [vmem:[#allocation2 + $0x100] sm:$0xff]
    %v77 = vld [vmem:[#allocation2 + $0x108] sm:$0xff]
    %v78 = vld [vmem:[#allocation2 + $0x110] sm:$0xff]
    %v79 = vld [vmem:[#allocation2 + $0x118] sm:$0xff]
    %v80 = vld [vmem:[#allocation2 + $0x120] sm:$0xff]
    %v81 = vld [vmem:[#allocation2 + $0x128] sm:$0xff]
    %v82 = vld [vmem:[#allocation2 + $0x130] sm:$0xff]
    %v83 = vld [vmem:[#allocation2 + $0x138] sm:$0xff]
    %v84 = vld [vmem:[#allocation2 + $0x140] sm:$0xff]
    %v85 = vld [vmem:[#allocation2 + $0x148] sm:$0xff]
    %v86 = vld [vmem:[#allocation2 + $0x150] sm:$0x3]
    %v87 = vld [vmem:[#allocation2 + $0x158] sm:$0x3]
    %v88 = vld [vmem:[#allocation2 + $0x160] sm:$0x3]
    %v89 = vld [vmem:[#allocation2 + $0x168] sm:$0x3]
    %v90 = vld [vmem:[#allocation2 + $0x170] sm:$0x3]
    %v91 = vld [vmem:[#allocation2 + $0x178] sm:$0x3]
    %v92 = vld [vmem:[#allocation2 + $0x180] sm:$0x3]
    %v93 = vld [vmem:[%s2] sm:$0x7f]
    %v95 = vlaneseq
    %v96 = vshrl.u32 %v95, 7
    %v97 = vsub.s32 0, %v96
    %v98 = vrot.slane %v93, %v97
    %v99 = vlaneseq
    %v100 = vshrl.u32 %v99, 7
    %v101 = vsub.s32 1, %v100
    %v102 = vrot.slane %v93, %v101
    %v103 = vlaneseq
    %v104 = vshrl.u32 %v103, 7
    %v105 = vsub.s32 2, %v104
    %v106 = vrot.slane %v93, %v105
    %v107 = vlaneseq
    %v108 = vshrl.u32 %v107, 7
    %v109 = vsub.s32 3, %v108
    %v110 = vrot.slane %v93, %v109
    %v111 = vlaneseq
    %v112 = vshrl.u32 %v111, 7
    %v113 = vsub.s32 4, %v112
    %v114 = vrot.slane %v93, %v113
    %v115 = vlaneseq
    %v116 = vshrl.u32 %v115, 7
    %v117 = vsub.s32 5, %v116
    %v118 = vrot.slane %v93, %v117
    %v119 = vlaneseq
    %v120 = vshrl.u32 %v119, 7
    %v121 = vsub.s32 6, %v120
    %v122 = vrot.slane %v93, %v121
    %vm130 = vcmask 408576
    %v132 = vsel %vm130, %v28, 0
    %v135 = vsel %vm130, %v29, 0
    %v138 = vsel %vm130, %v30, 0
    %v141 = vsel %vm130, %v31, 0
    %v144 = vsel %vm130, %v32, 0
    %v147 = vsel %vm130, %v33, 0
    %v150 = vsel %vm130, %v34, 0
    %v153 = vsel %vm130, %v35, 0
    %v156 = vsel %vm130, %v36, 0
    %v159 = vsel %vm130, %v37, 0
    %v162 = vsel %vm130, %v38, 0
    %v165 = vsel %vm130, %v39, 0
    %v168 = vsel %vm130, %v40, 0
    %v171 = vsel %vm130, %v41, 0
    %v174 = vsel %vm130, %v42, 0
    %v177 = vsel %vm130, %v43, 0
    %vm179 = vcmask 1041408
    %v181 = vsel %vm179, %v86, 0
    %v184 = vsel %vm179, %v87, 0
    %v187 = vsel %vm179, %v88, 0
    %v190 = vsel %vm179, %v89, 0
    %v193 = vsel %vm179, %v90, 0
    %v196 = vsel %vm179, %v91, 0
    %v199 = vsel %vm179, %v92, 0
    %201 = vmatprep.subr.mxu0 %v45
    %202 = vmatpush1.msra.mxu0 %v44
    %203 = vmatprep.subr.mxu0 %v52
    %204 = vmatpush1.msra.mxu0 %v51
    %205 = vmatprep.subr.mxu0 %v59
    %206 = vmatpush1.msra.mxu0 %v58
    %207 = vmatprep.subr.mxu0 %v66
    %208 = vmatpush1.msra.mxu0 %v65
    %209 = vmatprep.subr.mxu0 %v73
    %210 = vmatpush1.msra.mxu0 %v72
    %211 = vmatprep.subr.mxu0 %v80
    %212 = vmatpush1.msra.mxu0 %v79
    %213 = vmatprep.subr.mxu0 %v184
    %214 = vmatpush1.msra.mxu0 %v181
    %215 = vmatprep.subr.mxu0 0.0
    %216 = vmatpush1.msra.mxu0 0.0
    %217 = vmatprep.subr.mxu0 0.0
    %218 = vmatpush1.msra.mxu0 0.0
    %219 = vmatprep.subr.mxu0 0.0
    %220 = vmatpush1.msra.mxu0 0.0
    %221 = vmatprep.subr.mxu0 0.0
    %222 = vmatpush1.msra.mxu0 0.0
    %223 = vmatprep.subr.mxu0 0.0
    %224 = vmatpush1.msra.mxu0 0.0
    %225 = vmatprep.subr.mxu0 0.0
    %226 = vmatpush1.msra.mxu0 0.0
    %227 = vmatprep.subr.mxu0 0.0
    %228 = vmatpush1.msra.mxu0 0.0
    %229 = vmatprep.subr.mxu0 0.0
    %230 = vmatpush1.msra.mxu0 0.0
    %231 = vmatprep.subr.mxu0 0.0
    %232 = vmatpush1.msra.mxu0 0.0
    %233 = vmatprep.subr.mxu0 0.0
    %234 = vmatpush1.msra.mxu0 0.0
    %235 = vmatprep.subr.mxu0 0.0
    %236 = vmatpush1.msra.mxu0 0.0
    %237 = vmatprep.subr.mxu0 0.0
    %238 = vmatpush1.msra.mxu0 0.0
    %239 = vmatprep.subr.mxu0 0.0
    %240 = vmatpush1.msra.mxu0 0.0
    %241 = vmatprep.subr.mxu0 0.0
    %242 = vmatpush1.msra.mxu0 0.0
    %243 = vmatprep.subr.mxu0 0.0
    %244 = vmatpush1.msra.mxu0 0.0
    %245 = vmatprep.subr.mxu0 0.0
    %246 = vmatpush1.msra.mxu0 0.0
    %247 = vmatprep.subr.mxu0 0.0
    %248 = vmatpush1.msra.mxu0 0.0
    %249 = vmatprep.subr.mxu0 0.0
    %250 = vmatpush1.msra.mxu0 0.0
    %251 = vmatprep.subr.mxu0 0.0
    %252 = vmatpush1.msra.mxu0 0.0
    %253 = vmatprep.subr.mxu0 0.0
    %254 = vmatpush1.msra.mxu0 0.0
    %255 = vmatprep.subr.mxu0 0.0
    %256 = vmatpush1.msra.mxu0 0.0
    %257 = vmatprep.subr.mxu0 0.0
    %258 = vmatpush1.msra.mxu0 0.0
    %259 = vmatprep.subr.mxu0 0.0
    %260 = vmatpush1.msra.mxu0 0.0
    %261 = vmatprep.subr.mxu0 0.0
    %262 = vmatpush1.msra.mxu0 0.0
    %263 = vmatprep.subr.mxu0 0.0
    %264 = vmatpush1.msra.mxu0 0.0
    %265 = vmatprep.mubr.f32.mxu0 0.0
    %266 = vmatmul.mubr.f32.gmra.mrb[0].mxu0 %v132
    %v267 = vpop.f32.mrb[0].mxu0
    %v268 = vadd.f32 %v98, %v267
    %v269 = vpop.f32.mrb[0].mxu0
    %v270 = vadd.f32 %v102, %v269
    %271 = vmatprep.mubr.f32.mxu0 0.0
    %272 = vmatmul.mubr.f32.gmra.mrb[0].mxu0 %v135
    %v273 = vpop.f32.mrb[0].mxu0
    %v274 = vadd.f32 %v98, %v273
    %v275 = vpop.f32.mrb[0].mxu0
    %v276 = vadd.f32 %v102, %v275
    %277 = vmatprep.mubr.f32.mxu0 0.0
    %278 = vmatmul.mubr.f32.gmra.mrb[0].mxu0 %v138
    %v279 = vpop.f32.mrb[0].mxu0
    %v280 = vadd.f32 %v98, %v279
    %v281 = vpop.f32.mrb[0].mxu0
    %v282 = vadd.f32 %v102, %v281
    %283 = vmatprep.mubr.f32.mxu0 0.0
    %284 = vmatmul.mubr.f32.gmra.mrb[0].mxu0 %v141
    %v285 = vpop.f32.mrb[0].mxu0
    %v286 = vadd.f32 %v98, %v285
    %v287 = vpop.f32.mrb[0].mxu0
    %v288 = vadd.f32 %v102, %v287
    %289 = vmatprep.mubr.f32.mxu0 0.0
    %290 = vmatmul.mubr.f32.gmra.mrb[0].mxu0 %v144
    %v291 = vpop.f32.mrb[0].mxu0
    %v292 = vadd.f32 %v98, %v291
    %v293 = vpop.f32.mrb[0].mxu0
    %v294 = vadd.f32 %v102, %v293
    %295 = vmatprep.mubr.f32.mxu0 0.0
    %296 = vmatmul.mubr.f32.gmra.mrb[0].mxu0 %v147
    %v297 = vpop.f32.mrb[0].mxu0
    %v298 = vadd.f32 %v98, %v297
    %v299 = vpop.f32.mrb[0].mxu0
    %v300 = vadd.f32 %v102, %v299
    %301 = vmatprep.mubr.f32.mxu0 0.0
    %302 = vmatmul.mubr.f32.gmra.mrb[0].mxu0 %v150
    %v303 = vpop.f32.mrb[0].mxu0
    %v304 = vadd.f32 %v98, %v303
    %v305 = vpop.f32.mrb[0].mxu0
    %v306 = vadd.f32 %v102, %v305
    %307 = vmatprep.mubr.f32.mxu0 0.0
    %308 = vmatmul.mubr.f32.gmra.mrb[0].mxu0 %v153
    %v309 = vpop.f32.mrb[0].mxu0
    %v310 = vadd.f32 %v98, %v309
    %v311 = vpop.f32.mrb[0].mxu0
    %v312 = vadd.f32 %v102, %v311
    %313 = vmatprep.mubr.f32.mxu0 0.0
    %314 = vmatmul.mubr.f32.gmra.mrb[0].mxu0 %v156
    %v315 = vpop.f32.mrb[0].mxu0
    %v316 = vadd.f32 %v98, %v315
    %v317 = vpop.f32.mrb[0].mxu0
    %v318 = vadd.f32 %v102, %v317
    %319 = vmatprep.mubr.f32.mxu0 0.0
    %320 = vmatmul.mubr.f32.gmra.mrb[0].mxu0 %v159
    %v321 = vpop.f32.mrb[0].mxu0
    %v322 = vadd.f32 %v98, %v321
    %v323 = vpop.f32.mrb[0].mxu0
    %v324 = vadd.f32 %v102, %v323
    %325 = vmatprep.mubr.f32.mxu0 0.0
    %326 = vmatmul.mubr.f32.gmra.mrb[0].mxu0 %v162
    %v327 = vpop.f32.mrb[0].mxu0
    %v328 = vadd.f32 %v98, %v327
    %v329 = vpop.f32.mrb[0].mxu0
    %v330 = vadd.f32 %v102, %v329
    %331 = vmatprep.mubr.f32.mxu0 0.0
    %332 = vmatmul.mubr.f32.gmra.mrb[0].mxu0 %v165
    %v333 = vpop.f32.mrb[0].mxu0
    %v334 = vadd.f32 %v98, %v333
    %v335 = vpop.f32.mrb[0].mxu0
    %v336 = vadd.f32 %v102, %v335
    %337 = vmatprep.mubr.f32.mxu0 0.0
    %338 = vmatmul.mubr.f32.gmra.mrb[0].mxu0 %v168
    %v339 = vpop.f32.mrb[0].mxu0
    %v340 = vadd.f32 %v98, %v339
    %v341 = vpop.f32.mrb[0].mxu0
    %v342 = vadd.f32 %v102, %v341
    %343 = vmatprep.mubr.f32.mxu0 0.0
    %344 = vmatmul.mubr.f32.gmra.mrb[0].mxu0 %v171
    %v345 = vpop.f32.mrb[0].mxu0
    %v346 = vadd.f32 %v98, %v345
    %v347 = vpop.f32.mrb[0].mxu0
    %v348 = vadd.f32 %v102, %v347
    %349 = vmatprep.mubr.f32.mxu0 0.0
    %350 = vmatmul.mubr.f32.gmra.mrb[0].mxu0 %v174
    %v351 = vpop.f32.mrb[0].mxu0
    %v352 = vadd.f32 %v98, %v351
    %v353 = vpop.f32.mrb[0].mxu0
    %v354 = vadd.f32 %v102, %v353
    %355 = vmatprep.mubr.f32.mxu0 0.0
    %356 = vmatmul.mubr.f32.gmra.mrb[0].mxu0 %v177
    %v357 = vpop.f32.mrb[0].mxu0
    %v358 = vadd.f32 %v98, %v357
    %v359 = vpop.f32.mrb[0].mxu0
    %v360 = vadd.f32 %v102, %v359
    %361 = vdwg.mxu0
    %362 = vmatprep.subr.mxu0 %v47
    %363 = vmatpush1.msra.mxu0 %v46
    %364 = vmatprep.subr.mxu0 %v54
    %365 = vmatpush1.msra.mxu0 %v53
    %366 = vmatprep.subr.mxu0 %v61
    %367 = vmatpush1.msra.mxu0 %v60
    %368 = vmatprep.subr.mxu0 %v68
    %369 = vmatpush1.msra.mxu0 %v67
    %370 = vmatprep.subr.mxu0 %v75
    %371 = vmatpush1.msra.mxu0 %v74
    %372 = vmatprep.subr.mxu0 %v82
    %373 = vmatpush1.msra.mxu0 %v81
    %374 = vmatprep.subr.mxu0 %v190
    %375 = vmatpush1.msra.mxu0 %v187
    %376 = vmatprep.subr.mxu0 0.0
    %377 = vmatpush1.msra.mxu0 0.0
    %378 = vmatprep.subr.mxu0 0.0
    %379 = vmatpush1.msra.mxu0 0.0
    %380 = vmatprep.subr.mxu0 0.0
    %381 = vmatpush1.msra.mxu0 0.0
    %382 = vmatprep.subr.mxu0 0.0
    %383 = vmatpush1.msra.mxu0 0.0
    %384 = vmatprep.subr.mxu0 0.0
    %385 = vmatpush1.msra.mxu0 0.0
    %386 = vmatprep.subr.mxu0 0.0
    %387 = vmatpush1.msra.mxu0 0.0
    %388 = vmatprep.subr.mxu0 0.0
    %389 = vmatpush1.msra.mxu0 0.0
    %390 = vmatprep.subr.mxu0 0.0
    %391 = vmatpush1.msra.mxu0 0.0
    %392 = vmatprep.subr.mxu0 0.0
    %393 = vmatpush1.msra.mxu0 0.0
    %394 = vmatprep.subr.mxu0 0.0
    %395 = vmatpush1.msra.mxu0 0.0
    %396 = vmatprep.subr.mxu0 0.0
    %397 = vmatpush1.msra.mxu0 0.0
    %398 = vmatprep.subr.mxu0 0.0
    %399 = vmatpush1.msra.mxu0 0.0
    %400 = vmatprep.subr.mxu0 0.0
    %401 = vmatpush1.msra.mxu0 0.0
    %402 = vmatprep.subr.mxu0 0.0
    %403 = vmatpush1.msra.mxu0 0.0
    %404 = vmatprep.subr.mxu0 0.0
    %405 = vmatpush1.msra.mxu0 0.0
    %406 = vmatprep.subr.mxu0 0.0
    %407 = vmatpush1.msra.mxu0 0.0
    %408 = vmatprep.subr.mxu0 0.0
    %409 = vmatpush1.msra.mxu0 0.0
    %410 = vmatprep.subr.mxu0 0.0
    %411 = vmatpush1.msra.mxu0 0.0
    %412 = vmatprep.subr.mxu0 0.0
    %413 = vmatpush1.msra.mxu0 0.0
    %414 = vmatprep.subr.mxu0 0.0
    %415 = vmatpush1.msra.mxu0 0.0
    %416 = vmatprep.subr.mxu0 0.0
    %417 = vmatpush1.msra.mxu0 0.0
    %418 = vmatprep.subr.mxu0 0.0
    %419 = vmatpush1.msra.mxu0 0.0
    %420 = vmatprep.subr.mxu0 0.0
    %421 = vmatpush1.msra.mxu0 0.0
    %422 = vmatprep.subr.mxu0 0.0
    %423 = vmatpush1.msra.mxu0 0.0
    %424 = vmatprep.subr.mxu0 0.0
    %425 = vmatpush1.msra.mxu0 0.0
    %426 = vmatprep.mubr.f32.mxu0 0.0
    %427 = vmatmul.mubr.f32.gmra.mrb[0].mxu0 %v132
    %v428 = vpop.f32.mrb[0].mxu0
    %v429 = vadd.f32 %v106, %v428
    %v430 = vpop.f32.mrb[0].mxu0
    %v431 = vadd.f32 %v110, %v430
    %432 = vmatprep.mubr.f32.mxu0 0.0
    %433 = vmatmul.mubr.f32.gmra.mrb[0].mxu0 %v135
    %v434 = vpop.f32.mrb[0].mxu0
    %v435 = vadd.f32 %v106, %v434
    %v436 = vpop.f32.mrb[0].mxu0
    %v437 = vadd.f32 %v110, %v436
    %438 = vmatprep.mubr.f32.mxu0 0.0
    %439 = vmatmul.mubr.f32.gmra.mrb[0].mxu0 %v138
    %v440 = vpop.f32.mrb[0].mxu0
    %v441 = vadd.f32 %v106, %v440
    %v442 = vpop.f32.mrb[0].mxu0
    %v443 = vadd.f32 %v110, %v442
    %444 = vmatprep.mubr.f32.mxu0 0.0
    %445 = vmatmul.mubr.f32.gmra.mrb[0].mxu0 %v141
    %v446 = vpop.f32.mrb[0].mxu0
    %v447 = vadd.f32 %v106, %v446
    %v448 = vpop.f32.mrb[0].mxu0
    %v449 = vadd.f32 %v110, %v448
    %450 = vmatprep.mubr.f32.mxu0 0.0
    %451 = vmatmul.mubr.f32.gmra.mrb[0].mxu0 %v144
    %v452 = vpop.f32.mrb[0].mxu0
    %v453 = vadd.f32 %v106, %v452
    %v454 = vpop.f32.mrb[0].mxu0
    %v455 = vadd.f32 %v110, %v454
    %456 = vmatprep.mubr.f32.mxu0 0.0
    %457 = vmatmul.mubr.f32.gmra.mrb[0].mxu0 %v147
    %v458 = vpop.f32.mrb[0].mxu0
    %v459 = vadd.f32 %v106, %v458
    %v460 = vpop.f32.mrb[0].mxu0
    %v461 = vadd.f32 %v110, %v460
    %462 = vmatprep.mubr.f32.mxu0 0.0
    %463 = vmatmul.mubr.f32.gmra.mrb[0].mxu0 %v150
    %v464 = vpop.f32.mrb[0].mxu0
    %v465 = vadd.f32 %v106, %v464
    %v466 = vpop.f32.mrb[0].mxu0
    %v467 = vadd.f32 %v110, %v466
    %468 = vmatprep.mubr.f32.mxu0 0.0
    %469 = vmatmul.mubr.f32.gmra.mrb[0].mxu0 %v153
    %v470 = vpop.f32.mrb[0].mxu0
    %v471 = vadd.f32 %v106, %v470
    %v472 = vpop.f32.mrb[0].mxu0
    %v473 = vadd.f32 %v110, %v472
    %474 = vmatprep.mubr.f32.mxu0 0.0
    %475 = vmatmul.mubr.f32.gmra.mrb[0].mxu0 %v156
    %v476 = vpop.f32.mrb[0].mxu0
    %v477 = vadd.f32 %v106, %v476
    %v478 = vpop.f32.mrb[0].mxu0
    %v479 = vadd.f32 %v110, %v478
    %480 = vmatprep.mubr.f32.mxu0 0.0
    %481 = vmatmul.mubr.f32.gmra.mrb[0].mxu0 %v159
    %v482 = vpop.f32.mrb[0].mxu0
    %v483 = vadd.f32 %v106, %v482
    %v484 = vpop.f32.mrb[0].mxu0
    %v485 = vadd.f32 %v110, %v484
    %486 = vmatprep.mubr.f32.mxu0 0.0
    %487 = vmatmul.mubr.f32.gmra.mrb[0].mxu0 %v162
    %v488 = vpop.f32.mrb[0].mxu0
    %v489 = vadd.f32 %v106, %v488
    %v490 = vpop.f32.mrb[0].mxu0
    %v491 = vadd.f32 %v110, %v490
    %492 = vmatprep.mubr.f32.mxu0 0.0
    %493 = vmatmul.mubr.f32.gmra.mrb[0].mxu0 %v165
    %v494 = vpop.f32.mrb[0].mxu0
    %v495 = vadd.f32 %v106, %v494
    %v496 = vpop.f32.mrb[0].mxu0
    %v497 = vadd.f32 %v110, %v496
    %498 = vmatprep.mubr.f32.mxu0 0.0
    %499 = vmatmul.mubr.f32.gmra.mrb[0].mxu0 %v168
    %v500 = vpop.f32.mrb[0].mxu0
    %v501 = vadd.f32 %v106, %v500
    %v502 = vpop.f32.mrb[0].mxu0
    %v503 = vadd.f32 %v110, %v502
    %504 = vmatprep.mubr.f32.mxu0 0.0
    %505 = vmatmul.mubr.f32.gmra.mrb[0].mxu0 %v171
    %v506 = vpop.f32.mrb[0].mxu0
    %v507 = vadd.f32 %v106, %v506
    %v508 = vpop.f32.mrb[0].mxu0
    %v509 = vadd.f32 %v110, %v508
    %510 = vmatprep.mubr.f32.mxu0 0.0
    %511 = vmatmul.mubr.f32.gmra.mrb[0].mxu0 %v174
    %v512 = vpop.f32.mrb[0].mxu0
    %v513 = vadd.f32 %v106, %v512
    %v514 = vpop.f32.mrb[0].mxu0
    %v515 = vadd.f32 %v110, %v514
    %516 = vmatprep.mubr.f32.mxu0 0.0
    %517 = vmatmul.mubr.f32.gmra.mrb[0].mxu0 %v177
    %v518 = vpop.f32.mrb[0].mxu0
    %v519 = vadd.f32 %v106, %v518
    %v520 = vpop.f32.mrb[0].mxu0
    %v521 = vadd.f32 %v110, %v520
    %522 = vdwg.mxu0
    %523 = vmatprep.subr.mxu0 %v49
    %524 = vmatpush1.msra.mxu0 %v48
    %525 = vmatprep.subr.mxu0 %v56
    %526 = vmatpush1.msra.mxu0 %v55
    %527 = vmatprep.subr.mxu0 %v63
    %528 = vmatpush1.msra.mxu0 %v62
    %529 = vmatprep.subr.mxu0 %v70
    %530 = vmatpush1.msra.mxu0 %v69
    %531 = vmatprep.subr.mxu0 %v77
    %532 = vmatpush1.msra.mxu0 %v76
    %533 = vmatprep.subr.mxu0 %v84
    %534 = vmatpush1.msra.mxu0 %v83
    %535 = vmatprep.subr.mxu0 %v196
    %536 = vmatpush1.msra.mxu0 %v193
    %537 = vmatprep.subr.mxu0 0.0
    %538 = vmatpush1.msra.mxu0 0.0
    %539 = vmatprep.subr.mxu0 0.0
    %540 = vmatpush1.msra.mxu0 0.0
    %541 = vmatprep.subr.mxu0 0.0
    %542 = vmatpush1.msra.mxu0 0.0
    %543 = vmatprep.subr.mxu0 0.0
    %544 = vmatpush1.msra.mxu0 0.0
    %545 = vmatprep.subr.mxu0 0.0
    %546 = vmatpush1.msra.mxu0 0.0
    %547 = vmatprep.subr.mxu0 0.0
    %548 = vmatpush1.msra.mxu0 0.0
    %549 = vmatprep.subr.mxu0 0.0
    %550 = vmatpush1.msra.mxu0 0.0
    %551 = vmatprep.subr.mxu0 0.0
    %552 = vmatpush1.msra.mxu0 0.0
    %553 = vmatprep.subr.mxu0 0.0
    %554 = vmatpush1.msra.mxu0 0.0
    %555 = vmatprep.subr.mxu0 0.0
    %556 = vmatpush1.msra.mxu0 0.0
    %557 = vmatprep.subr.mxu0 0.0
    %558 = vmatpush1.msra.mxu0 0.0
    %559 = vmatprep.subr.mxu0 0.0
    %560 = vmatpush1.msra.mxu0 0.0
    %561 = vmatprep.subr.mxu0 0.0
    %562 = vmatpush1.msra.mxu0 0.0
    %563 = vmatprep.subr.mxu0 0.0
    %564 = vmatpush1.msra.mxu0 0.0
    %565 = vmatprep.subr.mxu0 0.0
    %566 = vmatpush1.msra.mxu0 0.0
    %567 = vmatprep.subr.mxu0 0.0
    %568 = vmatpush1.msra.mxu0 0.0
    %569 = vmatprep.subr.mxu0 0.0
    %570 = vmatpush1.msra.mxu0 0.0
    %571 = vmatprep.subr.mxu0 0.0
    %572 = vmatpush1.msra.mxu0 0.0
    %573 = vmatprep.subr.mxu0 0.0
    %574 = vmatpush1.msra.mxu0 0.0
    %575 = vmatprep.subr.mxu0 0.0
    %576 = vmatpush1.msra.mxu0 0.0
    %577 = vmatprep.subr.mxu0 0.0
    %578 = vmatpush1.msra.mxu0 0.0
    %579 = vmatprep.subr.mxu0 0.0
    %580 = vmatpush1.msra.mxu0 0.0
    %581 = vmatprep.subr.mxu0 0.0
    %582 = vmatpush1.msra.mxu0 0.0
    %583 = vmatprep.subr.mxu0 0.0
    %584 = vmatpush1.msra.mxu0 0.0
    %585 = vmatprep.subr.mxu0 0.0
    %586 = vmatpush1.msra.mxu0 0.0
    %587 = vmatprep.mubr.f32.mxu0 0.0
    %588 = vmatmul.mubr.f32.gmra.mrb[0].mxu0 %v132
    %v589 = vpop.f32.mrb[0].mxu0
    %v590 = vadd.f32 %v114, %v589
    %v591 = vpop.f32.mrb[0].mxu0
    %v592 = vadd.f32 %v118, %v591
    %593 = vmatprep.mubr.f32.mxu0 0.0
    %594 = vmatmul.mubr.f32.gmra.mrb[0].mxu0 %v135
    %v595 = vpop.f32.mrb[0].mxu0
    %v596 = vadd.f32 %v114, %v595
    %v597 = vpop.f32.mrb[0].mxu0
    %v598 = vadd.f32 %v118, %v597
    %599 = vmatprep.mubr.f32.mxu0 0.0
    %600 = vmatmul.mubr.f32.gmra.mrb[0].mxu0 %v138
    %v601 = vpop.f32.mrb[0].mxu0
    %v602 = vadd.f32 %v114, %v601
    %v603 = vpop.f32.mrb[0].mxu0
    %v604 = vadd.f32 %v118, %v603
    %605 = vmatprep.mubr.f32.mxu0 0.0
    %606 = vmatmul.mubr.f32.gmra.mrb[0].mxu0 %v141
    %v607 = vpop.f32.mrb[0].mxu0
    %v608 = vadd.f32 %v114, %v607
    %v609 = vpop.f32.mrb[0].mxu0
    %v610 = vadd.f32 %v118, %v609
    %611 = vmatprep.mubr.f32.mxu0 0.0
    %612 = vmatmul.mubr.f32.gmra.mrb[0].mxu0 %v144
    %v613 = vpop.f32.mrb[0].mxu0
    %v614 = vadd.f32 %v114, %v613
    %v615 = vpop.f32.mrb[0].mxu0
    %v616 = vadd.f32 %v118, %v615
    %617 = vmatprep.mubr.f32.mxu0 0.0
    %618 = vmatmul.mubr.f32.gmra.mrb[0].mxu0 %v147
    %v619 = vpop.f32.mrb[0].mxu0
    %v620 = vadd.f32 %v114, %v619
    %v621 = vpop.f32.mrb[0].mxu0
    %v622 = vadd.f32 %v118, %v621
    %623 = vmatprep.mubr.f32.mxu0 0.0
    %624 = vmatmul.mubr.f32.gmra.mrb[0].mxu0 %v150
    %v625 = vpop.f32.mrb[0].mxu0
    %v626 = vadd.f32 %v114, %v625
    %v627 = vpop.f32.mrb[0].mxu0
    %v628 = vadd.f32 %v118, %v627
    %629 = vmatprep.mubr.f32.mxu0 0.0
    %630 = vmatmul.mubr.f32.gmra.mrb[0].mxu0 %v153
    %v631 = vpop.f32.mrb[0].mxu0
    %v632 = vadd.f32 %v114, %v631
    %v633 = vpop.f32.mrb[0].mxu0
    %v634 = vadd.f32 %v118, %v633
    %635 = vmatprep.mubr.f32.mxu0 0.0
    %636 = vmatmul.mubr.f32.gmra.mrb[0].mxu0 %v156
    %v637 = vpop.f32.mrb[0].mxu0
    %v638 = vadd.f32 %v114, %v637
    %v639 = vpop.f32.mrb[0].mxu0
    %v640 = vadd.f32 %v118, %v639
    %641 = vmatprep.mubr.f32.mxu0 0.0
    %642 = vmatmul.mubr.f32.gmra.mrb[0].mxu0 %v159
    %v643 = vpop.f32.mrb[0].mxu0
    %v644 = vadd.f32 %v114, %v643
    %v645 = vpop.f32.mrb[0].mxu0
    %v646 = vadd.f32 %v118, %v645
    %647 = vmatprep.mubr.f32.mxu0 0.0
    %648 = vmatmul.mubr.f32.gmra.mrb[0].mxu0 %v162
    %v649 = vpop.f32.mrb[0].mxu0
    %v650 = vadd.f32 %v114, %v649
    %v651 = vpop.f32.mrb[0].mxu0
    %v652 = vadd.f32 %v118, %v651
    %653 = vmatprep.mubr.f32.mxu0 0.0
    %654 = vmatmul.mubr.f32.gmra.mrb[0].mxu0 %v165
    %v655 = vpop.f32.mrb[0].mxu0
    %v656 = vadd.f32 %v114, %v655
    %v657 = vpop.f32.mrb[0].mxu0
    %v658 = vadd.f32 %v118, %v657
    %659 = vmatprep.mubr.f32.mxu0 0.0
    %660 = vmatmul.mubr.f32.gmra.mrb[0].mxu0 %v168
    %v661 = vpop.f32.mrb[0].mxu0
    %v662 = vadd.f32 %v114, %v661
    %v663 = vpop.f32.mrb[0].mxu0
    %v664 = vadd.f32 %v118, %v663
    %665 = vmatprep.mubr.f32.mxu0 0.0
    %666 = vmatmul.mubr.f32.gmra.mrb[0].mxu0 %v171
    %v667 = vpop.f32.mrb[0].mxu0
    %v668 = vadd.f32 %v114, %v667
    %v669 = vpop.f32.mrb[0].mxu0
    %v670 = vadd.f32 %v118, %v669
    %671 = vmatprep.mubr.f32.mxu0 0.0
    %672 = vmatmul.mubr.f32.gmra.mrb[0].mxu0 %v174
    %v673 = vpop.f32.mrb[0].mxu0
    %v674 = vadd.f32 %v114, %v673
    %v675 = vpop.f32.mrb[0].mxu0
    %v676 = vadd.f32 %v118, %v675
    %677 = vmatprep.mubr.f32.mxu0 0.0
    %678 = vmatmul.mubr.f32.gmra.mrb[0].mxu0 %v177
    %v679 = vpop.f32.mrb[0].mxu0
    %v680 = vadd.f32 %v114, %v679
    %v681 = vpop.f32.mrb[0].mxu0
    %v682 = vadd.f32 %v118, %v681
    %683 = vdwg.mxu0
    %684 = vmatprep.subr.mxu0 0.0
    %685 = vmatpush1.msra.mxu0 %v50
    %686 = vmatprep.subr.mxu0 0.0
    %687 = vmatpush1.msra.mxu0 %v57
    %688 = vmatprep.subr.mxu0 0.0
    %689 = vmatpush1.msra.mxu0 %v64
    %690 = vmatprep.subr.mxu0 0.0
    %691 = vmatpush1.msra.mxu0 %v71
    %692 = vmatprep.subr.mxu0 0.0
    %693 = vmatpush1.msra.mxu0 %v78
    %694 = vmatprep.subr.mxu0 0.0
    %695 = vmatpush1.msra.mxu0 %v85
    %696 = vmatprep.subr.mxu0 0.0
    %697 = vmatpush1.msra.mxu0 %v199
    %698 = vmatprep.subr.mxu0 0.0
    %699 = vmatpush1.msra.mxu0 0.0
    %700 = vmatprep.subr.mxu0 0.0
    %701 = vmatpush1.msra.mxu0 0.0
    %702 = vmatprep.subr.mxu0 0.0
    %703 = vmatpush1.msra.mxu0 0.0
    %704 = vmatprep.subr.mxu0 0.0
    %705 = vmatpush1.msra.mxu0 0.0
    %706 = vmatprep.subr.mxu0 0.0
    %707 = vmatpush1.msra.mxu0 0.0
    %708 = vmatprep.subr.mxu0 0.0
    %709 = vmatpush1.msra.mxu0 0.0
    %710 = vmatprep.subr.mxu0 0.0
    %711 = vmatpush1.msra.mxu0 0.0
    %712 = vmatprep.subr.mxu0 0.0
    %713 = vmatpush1.msra.mxu0 0.0
    %714 = vmatprep.subr.mxu0 0.0
    %715 = vmatpush1.msra.mxu0 0.0
    %716 = vmatprep.subr.mxu0 0.0
    %717 = vmatpush1.msra.mxu0 0.0
    %718 = vmatprep.subr.mxu0 0.0
    %719 = vmatpush1.msra.mxu0 0.0
    %720 = vmatprep.subr.mxu0 0.0
    %721 = vmatpush1.msra.mxu0 0.0
    %722 = vmatprep.subr.mxu0 0.0
    %723 = vmatpush1.msra.mxu0 0.0
    %724 = vmatprep.subr.mxu0 0.0
    %725 = vmatpush1.msra.mxu0 0.0
    %726 = vmatprep.subr.mxu0 0.0
    %727 = vmatpush1.msra.mxu0 0.0
    %728 = vmatprep.subr.mxu0 0.0
    %729 = vmatpush1.msra.mxu0 0.0
    %730 = vmatprep.subr.mxu0 0.0
    %731 = vmatpush1.msra.mxu0 0.0
    %732 = vmatprep.subr.mxu0 0.0
    %733 = vmatpush1.msra.mxu0 0.0
    %734 = vmatprep.subr.mxu0 0.0
    %735 = vmatpush1.msra.mxu0 0.0
    %736 = vmatprep.subr.mxu0 0.0
    %737 = vmatpush1.msra.mxu0 0.0
    %738 = vmatprep.subr.mxu0 0.0
    %739 = vmatpush1.msra.mxu0 0.0
    %740 = vmatprep.subr.mxu0 0.0
    %741 = vmatpush1.msra.mxu0 0.0
    %742 = vmatprep.subr.mxu0 0.0
    %743 = vmatpush1.msra.mxu0 0.0
    %744 = vmatprep.subr.mxu0 0.0
    %745 = vmatpush1.msra.mxu0 0.0
    %746 = vmatprep.subr.mxu0 0.0
    %747 = vmatpush1.msra.mxu0 0.0
    %748 = vmatprep.mubr.f32.mxu0 0.0
    %749 = vmatmul.mubr.f32.gmra.mrb[0].mxu0 %v132
    %v750 = vpop.f32.mrb[0].mxu0
    %v751 = vadd.f32 %v122, %v750
    %v752 = vpop.f32.mrb[0].mxu0
    %753 = vmatprep.mubr.f32.mxu0 0.0
    %754 = vmatmul.mubr.f32.gmra.mrb[0].mxu0 %v135
    %v755 = vpop.f32.mrb[0].mxu0
    %v756 = vadd.f32 %v122, %v755
    %v757 = vpop.f32.mrb[0].mxu0
    %758 = vmatprep.mubr.f32.mxu0 0.0
    %759 = vmatmul.mubr.f32.gmra.mrb[0].mxu0 %v138
    %v760 = vpop.f32.mrb[0].mxu0
    %v761 = vadd.f32 %v122, %v760
    %v762 = vpop.f32.mrb[0].mxu0
    %763 = vmatprep.mubr.f32.mxu0 0.0
    %764 = vmatmul.mubr.f32.gmra.mrb[0].mxu0 %v141
    %v765 = vpop.f32.mrb[0].mxu0
    %v766 = vadd.f32 %v122, %v765
    %v767 = vpop.f32.mrb[0].mxu0
    %768 = vmatprep.mubr.f32.mxu0 0.0
    %769 = vmatmul.mubr.f32.gmra.mrb[0].mxu0 %v144
    %v770 = vpop.f32.mrb[0].mxu0
    %v771 = vadd.f32 %v122, %v770
    %v772 = vpop.f32.mrb[0].mxu0
    %773 = vmatprep.mubr.f32.mxu0 0.0
    %774 = vmatmul.mubr.f32.gmra.mrb[0].mxu0 %v147
    %v775 = vpop.f32.mrb[0].mxu0
    %v776 = vadd.f32 %v122, %v775
    %v777 = vpop.f32.mrb[0].mxu0
    %778 = vmatprep.mubr.f32.mxu0 0.0
    %779 = vmatmul.mubr.f32.gmra.mrb[0].mxu0 %v150
    %v780 = vpop.f32.mrb[0].mxu0
    %v781 = vadd.f32 %v122, %v780
    %v782 = vpop.f32.mrb[0].mxu0
    %783 = vmatprep.mubr.f32.mxu0 0.0
    %784 = vmatmul.mubr.f32.gmra.mrb[0].mxu0 %v153
    %v785 = vpop.f32.mrb[0].mxu0
    %v786 = vadd.f32 %v122, %v785
    %v787 = vpop.f32.mrb[0].mxu0
    %788 = vmatprep.mubr.f32.mxu0 0.0
    %789 = vmatmul.mubr.f32.gmra.mrb[0].mxu0 %v156
    %v790 = vpop.f32.mrb[0].mxu0
    %v791 = vadd.f32 %v122, %v790
    %v792 = vpop.f32.mrb[0].mxu0
    %793 = vmatprep.mubr.f32.mxu0 0.0
    %794 = vmatmul.mubr.f32.gmra.mrb[0].mxu0 %v159
    %v795 = vpop.f32.mrb[0].mxu0
    %v796 = vadd.f32 %v122, %v795
    %v797 = vpop.f32.mrb[0].mxu0
    %798 = vmatprep.mubr.f32.mxu0 0.0
    %799 = vmatmul.mubr.f32.gmra.mrb[0].mxu0 %v162
    %v800 = vpop.f32.mrb[0].mxu0
    %v801 = vadd.f32 %v122, %v800
    %v802 = vpop.f32.mrb[0].mxu0
    %803 = vmatprep.mubr.f32.mxu0 0.0
    %804 = vmatmul.mubr.f32.gmra.mrb[0].mxu0 %v165
    %v805 = vpop.f32.mrb[0].mxu0
    %v806 = vadd.f32 %v122, %v805
    %v807 = vpop.f32.mrb[0].mxu0
    %808 = vmatprep.mubr.f32.mxu0 0.0
    %809 = vmatmul.mubr.f32.gmra.mrb[0].mxu0 %v168
    %v810 = vpop.f32.mrb[0].mxu0
    %v811 = vadd.f32 %v122, %v810
    %v812 = vpop.f32.mrb[0].mxu0
    %813 = vmatprep.mubr.f32.mxu0 0.0
    %814 = vmatmul.mubr.f32.gmra.mrb[0].mxu0 %v171
    %v815 = vpop.f32.mrb[0].mxu0
    %v816 = vadd.f32 %v122, %v815
    %v817 = vpop.f32.mrb[0].mxu0
    %818 = vmatprep.mubr.f32.mxu0 0.0
    %819 = vmatmul.mubr.f32.gmra.mrb[0].mxu0 %v174
    %v820 = vpop.f32.mrb[0].mxu0
    %v821 = vadd.f32 %v122, %v820
    %v822 = vpop.f32.mrb[0].mxu0
    %823 = vmatprep.mubr.f32.mxu0 0.0
    %824 = vmatmul.mubr.f32.gmra.mrb[0].mxu0 %v177
    %v825 = vpop.f32.mrb[0].mxu0
    %v826 = vadd.f32 %v122, %v825
    %v827 = vpop.f32.mrb[0].mxu0
    %828 = vdwg.mxu0
    %v829 = vmul.f32 %v268, 0.5
    %v830 = vmul.f32 %v270, 0.5
    %v831 = vmul.f32 %v429, 0.5
    %v832 = vmul.f32 %v431, 0.5
    %v833 = vmul.f32 %v590, 0.5
    %v834 = vmul.f32 %v592, 0.5
    %v835 = vmul.f32 %v751, 0.5
    %v836 = vmul.f32 %v274, 0.5
    %v837 = vmul.f32 %v276, 0.5
    %v838 = vmul.f32 %v435, 0.5
    %v839 = vmul.f32 %v437, 0.5
    %v840 = vmul.f32 %v596, 0.5
    %v841 = vmul.f32 %v598, 0.5
    %v842 = vmul.f32 %v756, 0.5
    %v843 = vmul.f32 %v280, 0.5
    %v844 = vmul.f32 %v282, 0.5
    %v845 = vmul.f32 %v441, 0.5
    %v846 = vmul.f32 %v443, 0.5
    %v847 = vmul.f32 %v602, 0.5
    %v848 = vmul.f32 %v604, 0.5
    %v849 = vmul.f32 %v761, 0.5
    %v850 = vmul.f32 %v286, 0.5
    %v851 = vmul.f32 %v288, 0.5
    %v852 = vmul.f32 %v447, 0.5
    %v853 = vmul.f32 %v449, 0.5
    %v854 = vmul.f32 %v608, 0.5
    %v855 = vmul.f32 %v610, 0.5
    %v856 = vmul.f32 %v766, 0.5
    %v857 = vmul.f32 %v292, 0.5
    %v858 = vmul.f32 %v294, 0.5
    %v859 = vmul.f32 %v453, 0.5
    %v860 = vmul.f32 %v455, 0.5
    %v861 = vmul.f32 %v614, 0.5
    %v862 = vmul.f32 %v616, 0.5
    %v863 = vmul.f32 %v771, 0.5
    %v864 = vmul.f32 %v298, 0.5
    %v865 = vmul.f32 %v300, 0.5
    %v866 = vmul.f32 %v459, 0.5
    %v867 = vmul.f32 %v461, 0.5
    %v868 = vmul.f32 %v620, 0.5
    %v869 = vmul.f32 %v622, 0.5
    %v870 = vmul.f32 %v776, 0.5
    %v871 = vmul.f32 %v304, 0.5
    %v872 = vmul.f32 %v306, 0.5
    %v873 = vmul.f32 %v465, 0.5
    %v874 = vmul.f32 %v467, 0.5
    %v875 = vmul.f32 %v626, 0.5
    %v876 = vmul.f32 %v628, 0.5
    %v877 = vmul.f32 %v781, 0.5
    %v878 = vmul.f32 %v310, 0.5
    %v879 = vmul.f32 %v312, 0.5
    %v880 = vmul.f32 %v471, 0.5
    %v881 = vmul.f32 %v473, 0.5
    %v882 = vmul.f32 %v632, 0.5
    %v883 = vmul.f32 %v634, 0.5
    %v884 = vmul.f32 %v786, 0.5
    %v885 = vmul.f32 %v316, 0.5
    %v886 = vmul.f32 %v318, 0.5
    %v887 = vmul.f32 %v477, 0.5
    %v888 = vmul.f32 %v479, 0.5
    %v889 = vmul.f32 %v638, 0.5
    %v890 = vmul.f32 %v640, 0.5
    %v891 = vmul.f32 %v791, 0.5
    %v892 = vmul.f32 %v322, 0.5
    %v893 = vmul.f32 %v324, 0.5
    %v894 = vmul.f32 %v483, 0.5
    %v895 = vmul.f32 %v485, 0.5
    %v896 = vmul.f32 %v644, 0.5
    %v897 = vmul.f32 %v646, 0.5
    %v898 = vmul.f32 %v796, 0.5
    %v899 = vmul.f32 %v328, 0.5
    %v900 = vmul.f32 %v330, 0.5
    %v901 = vmul.f32 %v489, 0.5
    %v902 = vmul.f32 %v491, 0.5
    %v903 = vmul.f32 %v650, 0.5
    %v904 = vmul.f32 %v652, 0.5
    %v905 = vmul.f32 %v801, 0.5
    %v906 = vmul.f32 %v334, 0.5
    %v907 = vmul.f32 %v336, 0.5
    %v908 = vmul.f32 %v495, 0.5
    %v909 = vmul.f32 %v497, 0.5
    %v910 = vmul.f32 %v656, 0.5
    %v911 = vmul.f32 %v658, 0.5
    %v912 = vmul.f32 %v806, 0.5
    %v913 = vmul.f32 %v340, 0.5
    %v914 = vmul.f32 %v342, 0.5
    %v915 = vmul.f32 %v501, 0.5
    %v916 = vmul.f32 %v503, 0.5
    %v917 = vmul.f32 %v662, 0.5
    %v918 = vmul.f32 %v664, 0.5
    %v919 = vmul.f32 %v811, 0.5
    %v920 = vmul.f32 %v346, 0.5
    %v921 = vmul.f32 %v348, 0.5
    %v922 = vmul.f32 %v507, 0.5
    %v923 = vmul.f32 %v509, 0.5
    %v924 = vmul.f32 %v668, 0.5
    %v925 = vmul.f32 %v670, 0.5
    %v926 = vmul.f32 %v816, 0.5
    %v927 = vmul.f32 %v352, 0.5
    %v928 = vmul.f32 %v354, 0.5
    %v929 = vmul.f32 %v513, 0.5
    %v930 = vmul.f32 %v515, 0.5
    %v931 = vmul.f32 %v674, 0.5
    %v932 = vmul.f32 %v676, 0.5
    %v933 = vmul.f32 %v821, 0.5
    %v934 = vmul.f32 %v358, 0.5
    %v935 = vmul.f32 %v360, 0.5
    %v936 = vmul.f32 %v519, 0.5
    %v937 = vmul.f32 %v521, 0.5
    %v938 = vmul.f32 %v680, 0.5
    %v939 = vmul.f32 %v682, 0.5
    %v940 = vmul.f32 %v826, 0.5
    %v941 = vtanh.pop %v829
    %v942 = vtanh.pop %v830
    %v943 = vtanh.pop %v831
    %v944 = vtanh.pop %v832
    %v945 = vtanh.pop %v833
    %v946 = vtanh.pop %v834
    %v947 = vtanh.pop %v835
    %v948 = vtanh.pop %v836
    %v949 = vtanh.pop %v837
    %v950 = vtanh.pop %v838
    %v951 = vtanh.pop %v839
    %v952 = vtanh.pop %v840
    %v953 = vtanh.pop %v841
    %v954 = vtanh.pop %v842
    %v955 = vtanh.pop %v843
    %v956 = vtanh.pop %v844
    %v957 = vtanh.pop %v845
    %v958 = vtanh.pop %v846
    %v959 = vtanh.pop %v847
    %v960 = vtanh.pop %v848
    %v961 = vtanh.pop %v849
    %v962 = vtanh.pop %v850
    %v963 = vtanh.pop %v851
    %v964 = vtanh.pop %v852
    %v965 = vtanh.pop %v853
    %v966 = vtanh.pop %v854
    %v967 = vtanh.pop %v855
    %v968 = vtanh.pop %v856
    %v969 = vtanh.pop %v857
    %v970 = vtanh.pop %v858
    %v971 = vtanh.pop %v859
    %v972 = vtanh.pop %v860
    %v973 = vtanh.pop %v861
    %v974 = vtanh.pop %v862
    %v975 = vtanh.pop %v863
    %v976 = vtanh.pop %v864
    %v977 = vtanh.pop %v865
    %v978 = vtanh.pop %v866
    %v979 = vtanh.pop %v867
    %v980 = vtanh.pop %v868
    %v981 = vtanh.pop %v869
    %v982 = vtanh.pop %v870
    %v983 = vtanh.pop %v871
    %v984 = vtanh.pop %v872
    %v985 = vtanh.pop %v873
    %v986 = vtanh.pop %v874
    %v987 = vtanh.pop %v875
    %v988 = vtanh.pop %v876
    %v989 = vtanh.pop %v877
    %v990 = vtanh.pop %v878
    %v991 = vtanh.pop %v879
    %v992 = vtanh.pop %v880
    %v993 = vtanh.pop %v881
    %v994 = vtanh.pop %v882
    %v995 = vtanh.pop %v883
    %v996 = vtanh.pop %v884
    %v997 = vtanh.pop %v885
    %v998 = vtanh.pop %v886
    %v999 = vtanh.pop %v887
    %v1000 = vtanh.pop %v888
    %v1001 = vtanh.pop %v889
    %v1002 = vtanh.pop %v890
    %v1003 = vtanh.pop %v891
    %v1004 = vtanh.pop %v892
    %v1005 = vtanh.pop %v893
    %v1006 = vtanh.pop %v894
    %v1007 = vtanh.pop %v895
    %v1008 = vtanh.pop %v896
    %v1009 = vtanh.pop %v897
    %v1010 = vtanh.pop %v898
    %v1011 = vtanh.pop %v899
    %v1012 = vtanh.pop %v900
    %v1013 = vtanh.pop %v901
    %v1014 = vtanh.pop %v902
    %v1015 = vtanh.pop %v903
    %v1016 = vtanh.pop %v904
    %v1017 = vtanh.pop %v905
    %v1018 = vtanh.pop %v906
    %v1019 = vtanh.pop %v907
    %v1020 = vtanh.pop %v908
    %v1021 = vtanh.pop %v909
    %v1022 = vtanh.pop %v910
    %v1023 = vtanh.pop %v911
    %v1024 = vtanh.pop %v912
    %v1025 = vtanh.pop %v913
    %v1026 = vtanh.pop %v914
    %v1027 = vtanh.pop %v915
    %v1028 = vtanh.pop %v916
    %v1029 = vtanh.pop %v917
    %v1030 = vtanh.pop %v918
    %v1031 = vtanh.pop %v919
    %v1032 = vtanh.pop %v920
    %v1033 = vtanh.pop %v921
    %v1034 = vtanh.pop %v922
    %v1035 = vtanh.pop %v923
    %v1036 = vtanh.pop %v924
    %v1037 = vtanh.pop %v925
    %v1038 = vtanh.pop %v926
    %v1039 = vtanh.pop %v927
    %v1040 = vtanh.pop %v928
    %v1041 = vtanh.pop %v929
    %v1042 = vtanh.pop %v930
    %v1043 = vtanh.pop %v931
    %v1044 = vtanh.pop %v932
    %v1045 = vtanh.pop %v933
    %v1046 = vtanh.pop %v934
    %v1047 = vtanh.pop %v935
    %v1048 = vtanh.pop %v936
    %v1049 = vtanh.pop %v937
    %v1050 = vtanh.pop %v938
    %v1051 = vtanh.pop %v939
    %v1052 = vtanh.pop %v940
    %v1053 = vmul.f32 %v941, 0.5
    %v1054 = vmul.f32 %v942, 0.5
    %v1055 = vmul.f32 %v943, 0.5
    %v1056 = vmul.f32 %v944, 0.5
    %v1057 = vmul.f32 %v945, 0.5
    %v1058 = vmul.f32 %v946, 0.5
    %v1059 = vmul.f32 %v947, 0.5
    %v1060 = vmul.f32 %v948, 0.5
    %v1061 = vmul.f32 %v949, 0.5
    %v1062 = vmul.f32 %v950, 0.5
    %v1063 = vmul.f32 %v951, 0.5
    %v1064 = vmul.f32 %v952, 0.5
    %v1065 = vmul.f32 %v953, 0.5
    %v1066 = vmul.f32 %v954, 0.5
    %v1067 = vmul.f32 %v955, 0.5
    %v1068 = vmul.f32 %v956, 0.5
    %v1069 = vmul.f32 %v957, 0.5
    %v1070 = vmul.f32 %v958, 0.5
    %v1071 = vmul.f32 %v959, 0.5
    %v1072 = vmul.f32 %v960, 0.5
    %v1073 = vmul.f32 %v961, 0.5
    %v1074 = vmul.f32 %v962, 0.5
    %v1075 = vmul.f32 %v963, 0.5
    %v1076 = vmul.f32 %v964, 0.5
    %v1077 = vmul.f32 %v965, 0.5
    %v1078 = vmul.f32 %v966, 0.5
    %v1079 = vmul.f32 %v967, 0.5
    %v1080 = vmul.f32 %v968, 0.5
    %v1081 = vmul.f32 %v969, 0.5
    %v1082 = vmul.f32 %v970, 0.5
    %v1083 = vmul.f32 %v971, 0.5
    %v1084 = vmul.f32 %v972, 0.5
    %v1085 = vmul.f32 %v973, 0.5
    %v1086 = vmul.f32 %v974, 0.5
    %v1087 = vmul.f32 %v975, 0.5
    %v1088 = vmul.f32 %v976, 0.5
    %v1089 = vmul.f32 %v977, 0.5
    %v1090 = vmul.f32 %v978, 0.5
    %v1091 = vmul.f32 %v979, 0.5
    %v1092 = vmul.f32 %v980, 0.5
    %v1093 = vmul.f32 %v981, 0.5
    %v1094 = vmul.f32 %v982, 0.5
    %v1095 = vmul.f32 %v983, 0.5
    %v1096 = vmul.f32 %v984, 0.5
    %v1097 = vmul.f32 %v985, 0.5
    %v1098 = vmul.f32 %v986, 0.5
    %v1099 = vmul.f32 %v987, 0.5
    %v1100 = vmul.f32 %v988, 0.5
    %v1101 = vmul.f32 %v989, 0.5
    %v1102 = vmul.f32 %v990, 0.5
    %v1103 = vmul.f32 %v991, 0.5
    %v1104 = vmul.f32 %v992, 0.5
    %v1105 = vmul.f32 %v993, 0.5
    %v1106 = vmul.f32 %v994, 0.5
    %v1107 = vmul.f32 %v995, 0.5
    %v1108 = vmul.f32 %v996, 0.5
    %v1109 = vmul.f32 %v997, 0.5
    %v1110 = vmul.f32 %v998, 0.5
    %v1111 = vmul.f32 %v999, 0.5
    %v1112 = vmul.f32 %v1000, 0.5
    %v1113 = vmul.f32 %v1001, 0.5
    %v1114 = vmul.f32 %v1002, 0.5
    %v1115 = vmul.f32 %v1003, 0.5
    %v1116 = vmul.f32 %v1004, 0.5
    %v1117 = vmul.f32 %v1005, 0.5
    %v1118 = vmul.f32 %v1006, 0.5
    %v1119 = vmul.f32 %v1007, 0.5
    %v1120 = vmul.f32 %v1008, 0.5
    %v1121 = vmul.f32 %v1009, 0.5
    %v1122 = vmul.f32 %v1010, 0.5
    %v1123 = vmul.f32 %v1011, 0.5
    %v1124 = vmul.f32 %v1012, 0.5
    %v1125 = vmul.f32 %v1013, 0.5
    %v1126 = vmul.f32 %v1014, 0.5
    %v1127 = vmul.f32 %v1015, 0.5
    %v1128 = vmul.f32 %v1016, 0.5
    %v1129 = vmul.f32 %v1017, 0.5
    %v1130 = vmul.f32 %v1018, 0.5
    %v1131 = vmul.f32 %v1019, 0.5
    %v1132 = vmul.f32 %v1020, 0.5
    %v1133 = vmul.f32 %v1021, 0.5
    %v1134 = vmul.f32 %v1022, 0.5
    %v1135 = vmul.f32 %v1023, 0.5
    %v1136 = vmul.f32 %v1024, 0.5
    %v1137 = vmul.f32 %v1025, 0.5
    %v1138 = vmul.f32 %v1026, 0.5
    %v1139 = vmul.f32 %v1027, 0.5
    %v1140 = vmul.f32 %v1028, 0.5
    %v1141 = vmul.f32 %v1029, 0.5
    %v1142 = vmul.f32 %v1030, 0.5
    %v1143 = vmul.f32 %v1031, 0.5
    %v1144 = vmul.f32 %v1032, 0.5
    %v1145 = vmul.f32 %v1033, 0.5
    %v1146 = vmul.f32 %v1034, 0.5
    %v1147 = vmul.f32 %v1035, 0.5
    %v1148 = vmul.f32 %v1036, 0.5
    %v1149 = vmul.f32 %v1037, 0.5
    %v1150 = vmul.f32 %v1038, 0.5
    %v1151 = vmul.f32 %v1039, 0.5
    %v1152 = vmul.f32 %v1040, 0.5
    %v1153 = vmul.f32 %v1041, 0.5
    %v1154 = vmul.f32 %v1042, 0.5
    %v1155 = vmul.f32 %v1043, 0.5
    %v1156 = vmul.f32 %v1044, 0.5
    %v1157 = vmul.f32 %v1045, 0.5
    %v1158 = vmul.f32 %v1046, 0.5
    %v1159 = vmul.f32 %v1047, 0.5
    %v1160 = vmul.f32 %v1048, 0.5
    %v1161 = vmul.f32 %v1049, 0.5
    %v1162 = vmul.f32 %v1050, 0.5
    %v1163 = vmul.f32 %v1051, 0.5
    %v1164 = vmul.f32 %v1052, 0.5
    %v1165 = vadd.f32 %v1053, 0.5
    %v1166 = vadd.f32 %v1054, 0.5
    %v1167 = vadd.f32 %v1055, 0.5
    %v1168 = vadd.f32 %v1056, 0.5
    %v1169 = vadd.f32 %v1057, 0.5
    %v1170 = vadd.f32 %v1058, 0.5
    %v1171 = vadd.f32 %v1059, 0.5
    %v1172 = vadd.f32 %v1060, 0.5
    %v1173 = vadd.f32 %v1061, 0.5
    %v1174 = vadd.f32 %v1062, 0.5
    %v1175 = vadd.f32 %v1063, 0.5
    %v1176 = vadd.f32 %v1064, 0.5
    %v1177 = vadd.f32 %v1065, 0.5
    %v1178 = vadd.f32 %v1066, 0.5
    %v1179 = vadd.f32 %v1067, 0.5
    %v1180 = vadd.f32 %v1068, 0.5
    %v1181 = vadd.f32 %v1069, 0.5
    %v1182 = vadd.f32 %v1070, 0.5
    %v1183 = vadd.f32 %v1071, 0.5
    %v1184 = vadd.f32 %v1072, 0.5
    %v1185 = vadd.f32 %v1073, 0.5
    %v1186 = vadd.f32 %v1074, 0.5
    %v1187 = vadd.f32 %v1075, 0.5
    %v1188 = vadd.f32 %v1076, 0.5
    %v1189 = vadd.f32 %v1077, 0.5
    %v1190 = vadd.f32 %v1078, 0.5
    %v1191 = vadd.f32 %v1079, 0.5
    %v1192 = vadd.f32 %v1080, 0.5
    %v1193 = vadd.f32 %v1081, 0.5
    %v1194 = vadd.f32 %v1082, 0.5
    %v1195 = vadd.f32 %v1083, 0.5
    %v1196 = vadd.f32 %v1084, 0.5
    %v1197 = vadd.f32 %v1085, 0.5
    %v1198 = vadd.f32 %v1086, 0.5
    %v1199 = vadd.f32 %v1087, 0.5
    %v1200 = vadd.f32 %v1088, 0.5
    %v1201 = vadd.f32 %v1089, 0.5
    %v1202 = vadd.f32 %v1090, 0.5
    %v1203 = vadd.f32 %v1091, 0.5
    %v1204 = vadd.f32 %v1092, 0.5
    %v1205 = vadd.f32 %v1093, 0.5
    %v1206 = vadd.f32 %v1094, 0.5
    %v1207 = vadd.f32 %v1095, 0.5
    %v1208 = vadd.f32 %v1096, 0.5
    %v1209 = vadd.f32 %v1097, 0.5
    %v1210 = vadd.f32 %v1098, 0.5
    %v1211 = vadd.f32 %v1099, 0.5
    %v1212 = vadd.f32 %v1100, 0.5
    %v1213 = vadd.f32 %v1101, 0.5
    %v1214 = vadd.f32 %v1102, 0.5
    %v1215 = vadd.f32 %v1103, 0.5
    %v1216 = vadd.f32 %v1104, 0.5
    %v1217 = vadd.f32 %v1105, 0.5
    %v1218 = vadd.f32 %v1106, 0.5
    %v1219 = vadd.f32 %v1107, 0.5
    %v1220 = vadd.f32 %v1108, 0.5
    %v1221 = vadd.f32 %v1109, 0.5
    %v1222 = vadd.f32 %v1110, 0.5
    %v1223 = vadd.f32 %v1111, 0.5
    %v1224 = vadd.f32 %v1112, 0.5
    %v1225 = vadd.f32 %v1113, 0.5
    %v1226 = vadd.f32 %v1114, 0.5
    %v1227 = vadd.f32 %v1115, 0.5
    %v1228 = vadd.f32 %v1116, 0.5
    %v1229 = vadd.f32 %v1117, 0.5
    %v1230 = vadd.f32 %v1118, 0.5
    %v1231 = vadd.f32 %v1119, 0.5
    %v1232 = vadd.f32 %v1120, 0.5
    %v1233 = vadd.f32 %v1121, 0.5
    %v1234 = vadd.f32 %v1122, 0.5
    %v1235 = vadd.f32 %v1123, 0.5
    %v1236 = vadd.f32 %v1124, 0.5
    %v1237 = vadd.f32 %v1125, 0.5
    %v1238 = vadd.f32 %v1126, 0.5
    %v1239 = vadd.f32 %v1127, 0.5
    %v1240 = vadd.f32 %v1128, 0.5
    %v1241 = vadd.f32 %v1129, 0.5
    %v1242 = vadd.f32 %v1130, 0.5
    %v1243 = vadd.f32 %v1131, 0.5
    %v1244 = vadd.f32 %v1132, 0.5
    %v1245 = vadd.f32 %v1133, 0.5
    %v1246 = vadd.f32 %v1134, 0.5
    %v1247 = vadd.f32 %v1135, 0.5
    %v1248 = vadd.f32 %v1136, 0.5
    %v1249 = vadd.f32 %v1137, 0.5
    %v1250 = vadd.f32 %v1138, 0.5
    %v1251 = vadd.f32 %v1139, 0.5
    %v1252 = vadd.f32 %v1140, 0.5
    %v1253 = vadd.f32 %v1141, 0.5
    %v1254 = vadd.f32 %v1142, 0.5
    %v1255 = vadd.f32 %v1143, 0.5
    %v1256 = vadd.f32 %v1144, 0.5
    %v1257 = vadd.f32 %v1145, 0.5
    %v1258 = vadd.f32 %v1146, 0.5
    %v1259 = vadd.f32 %v1147, 0.5
    %v1260 = vadd.f32 %v1148, 0.5
    %v1261 = vadd.f32 %v1149, 0.5
    %v1262 = vadd.f32 %v1150, 0.5
    %v1263 = vadd.f32 %v1151, 0.5
    %v1264 = vadd.f32 %v1152, 0.5
    %v1265 = vadd.f32 %v1153, 0.5
    %v1266 = vadd.f32 %v1154, 0.5
    %v1267 = vadd.f32 %v1155, 0.5
    %v1268 = vadd.f32 %v1156, 0.5
    %v1269 = vadd.f32 %v1157, 0.5
    %v1270 = vadd.f32 %v1158, 0.5
    %v1271 = vadd.f32 %v1159, 0.5
    %v1272 = vadd.f32 %v1160, 0.5
    %v1273 = vadd.f32 %v1161, 0.5
    %v1274 = vadd.f32 %v1162, 0.5
    %v1275 = vadd.f32 %v1163, 0.5
    %v1276 = vadd.f32 %v1164, 0.5
    %1277 = vst [vmem:[%s3] sm:$0xff] %v1165
    %1278 = vst [vmem:[%s3 + $0x8] sm:$0xff] %v1166
    %1279 = vst [vmem:[%s3 + $0x10] sm:$0xff] %v1167
    %1280 = vst [vmem:[%s3 + $0x18] sm:$0xff] %v1168
    %1281 = vst [vmem:[%s3 + $0x20] sm:$0xff] %v1169
    %1282 = vst [vmem:[%s3 + $0x28] sm:$0xff] %v1170
    %vm1283 = vcmask 130048
    %1284 = vst.msk [vmem:[%s3 + $0x30] sm:$0xff] %vm1283, %v1171
    %1285 = vst [vmem:[%s3 + $0x38] sm:$0xff] %v1172
    %1286 = vst [vmem:[%s3 + $0x40] sm:$0xff] %v1173
    %1287 = vst [vmem:[%s3 + $0x48] sm:$0xff] %v1174
    %1288 = vst [vmem:[%s3 + $0x50] sm:$0xff] %v1175
    %1289 = vst [vmem:[%s3 + $0x58] sm:$0xff] %v1176
    %1290 = vst [vmem:[%s3 + $0x60] sm:$0xff] %v1177
    %1291 = vst.msk [vmem:[%s3 + $0x68] sm:$0xff] %vm1283, %v1178
    %1292 = vst [vmem:[%s3 + $0x70] sm:$0xff] %v1179
    %1293 = vst [vmem:[%s3 + $0x78] sm:$0xff] %v1180
    %1294 = vst [vmem:[%s3 + $0x80] sm:$0xff] %v1181
    %1295 = vst [vmem:[%s3 + $0x88] sm:$0xff] %v1182
    %1296 = vst [vmem:[%s3 + $0x90] sm:$0xff] %v1183
    %1297 = vst [vmem:[%s3 + $0x98] sm:$0xff] %v1184
    %1298 = vst.msk [vmem:[%s3 + $0xa0] sm:$0xff] %vm1283, %v1185
    %1299 = vst [vmem:[%s3 + $0xa8] sm:$0xff] %v1186
    %1300 = vst [vmem:[%s3 + $0xb0] sm:$0xff] %v1187
    %1301 = vst [vmem:[%s3 + $0xb8] sm:$0xff] %v1188
    %1302 = vst [vmem:[%s3 + $0xc0] sm:$0xff] %v1189
    %1303 = vst [vmem:[%s3 + $0xc8] sm:$0xff] %v1190
    %1304 = vst [vmem:[%s3 + $0xd0] sm:$0xff] %v1191
    %1305 = vst.msk [vmem:[%s3 + $0xd8] sm:$0xff] %vm1283, %v1192
    %1306 = vst [vmem:[%s3 + $0xe0] sm:$0xff] %v1193
    %1307 = vst [vmem:[%s3 + $0xe8] sm:$0xff] %v1194
    %1308 = vst [vmem:[%s3 + $0xf0] sm:$0xff] %v1195
    %1309 = vst [vmem:[%s3 + $0xf8] sm:$0xff] %v1196
    %1310 = vst [vmem:[%s3 + $0x100] sm:$0xff] %v1197
    %1311 = vst [vmem:[%s3 + $0x108] sm:$0xff] %v1198
    %1312 = vst.msk [vmem:[%s3 + $0x110] sm:$0xff] %vm1283, %v1199
    %1313 = vst [vmem:[%s3 + $0x118] sm:$0xff] %v1200
    %1314 = vst [vmem:[%s3 + $0x120] sm:$0xff] %v1201
    %1315 = vst [vmem:[%s3 + $0x128] sm:$0xff] %v1202
    %1316 = vst [vmem:[%s3 + $0x130] sm:$0xff] %v1203
    %1317 = vst [vmem:[%s3 + $0x138] sm:$0xff] %v1204
    %1318 = vst [vmem:[%s3 + $0x140] sm:$0xff] %v1205
    %1319 = vst.msk [vmem:[%s3 + $0x148] sm:$0xff] %vm1283, %v1206
    %1320 = vst [vmem:[%s3 + $0x150] sm:$0xff] %v1207
    %1321 = vst [vmem:[%s3 + $0x158] sm:$0xff] %v1208
    %1322 = vst [vmem:[%s3 + $0x160] sm:$0xff] %v1209
    %1323 = vst [vmem:[%s3 + $0x168] sm:$0xff] %v1210
    %1324 = vst [vmem:[%s3 + $0x170] sm:$0xff] %v1211
    %1325 = vst [vmem:[%s3 + $0x178] sm:$0xff] %v1212
    %1326 = vst.msk [vmem:[%s3 + $0x180] sm:$0xff] %vm1283, %v1213
    %1327 = vst [vmem:[%s3 + $0x188] sm:$0xff] %v1214
    %1328 = vst [vmem:[%s3 + $0x190] sm:$0xff] %v1215
    %1329 = vst [vmem:[%s3 + $0x198] sm:$0xff] %v1216
    %1330 = vst [vmem:[%s3 + $0x1a0] sm:$0xff] %v1217
    %1331 = vst [vmem:[%s3 + $0x1a8] sm:$0xff] %v1218
    %1332 = vst [vmem:[%s3 + $0x1b0] sm:$0xff] %v1219
    %1333 = vst.msk [vmem:[%s3 + $0x1b8] sm:$0xff] %vm1283, %v1220
    %1334 = vst [vmem:[%s3 + $0x1c0] sm:$0xff] %v1221
    %1335 = vst [vmem:[%s3 + $0x1c8] sm:$0xff] %v1222
    %1336 = vst [vmem:[%s3 + $0x1d0] sm:$0xff] %v1223
    %1337 = vst [vmem:[%s3 + $0x1d8] sm:$0xff] %v1224
    %1338 = vst [vmem:[%s3 + $0x1e0] sm:$0xff] %v1225
    %1339 = vst [vmem:[%s3 + $0x1e8] sm:$0xff] %v1226
    %1340 = vst.msk [vmem:[%s3 + $0x1f0] sm:$0xff] %vm1283, %v1227
    %1341 = vst [vmem:[%s3 + $0x1f8] sm:$0xff] %v1228
    %1342 = vst [vmem:[%s3 + $0x200] sm:$0xff] %v1229
    %1343 = vst [vmem:[%s3 + $0x208] sm:$0xff] %v1230
    %1344 = vst [vmem:[%s3 + $0x210] sm:$0xff] %v1231
    %1345 = vst [vmem:[%s3 + $0x218] sm:$0xff] %v1232
    %1346 = vst [vmem:[%s3 + $0x220] sm:$0xff] %v1233
    %1347 = vst.msk [vmem:[%s3 + $0x228] sm:$0xff] %vm1283, %v1234
    %1348 = vst [vmem:[%s3 + $0x230] sm:$0xff] %v1235
    %1349 = vst [vmem:[%s3 + $0x238] sm:$0xff] %v1236
    %1350 = vst [vmem:[%s3 + $0x240] sm:$0xff] %v1237
    %1351 = vst [vmem:[%s3 + $0x248] sm:$0xff] %v1238
    %1352 = vst [vmem:[%s3 + $0x250] sm:$0xff] %v1239
    %1353 = vst [vmem:[%s3 + $0x258] sm:$0xff] %v1240
    %1354 = vst.msk [vmem:[%s3 + $0x260] sm:$0xff] %vm1283, %v1241
    %1355 = vst [vmem:[%s3 + $0x268] sm:$0xff] %v1242
    %1356 = vst [vmem:[%s3 + $0x270] sm:$0xff] %v1243
    %1357 = vst [vmem:[%s3 + $0x278] sm:$0xff] %v1244
    %1358 = vst [vmem:[%s3 + $0x280] sm:$0xff] %v1245
    %1359 = vst [vmem:[%s3 + $0x288] sm:$0xff] %v1246
    %1360 = vst [vmem:[%s3 + $0x290] sm:$0xff] %v1247
    %1361 = vst.msk [vmem:[%s3 + $0x298] sm:$0xff] %vm1283, %v1248
    %1362 = vst [vmem:[%s3 + $0x2a0] sm:$0xff] %v1249
    %1363 = vst [vmem:[%s3 + $0x2a8] sm:$0xff] %v1250
    %1364 = vst [vmem:[%s3 + $0x2b0] sm:$0xff] %v1251
    %1365 = vst [vmem:[%s3 + $0x2b8] sm:$0xff] %v1252
    %1366 = vst [vmem:[%s3 + $0x2c0] sm:$0xff] %v1253
    %1367 = vst [vmem:[%s3 + $0x2c8] sm:$0xff] %v1254
    %1368 = vst.msk [vmem:[%s3 + $0x2d0] sm:$0xff] %vm1283, %v1255
    %1369 = vst [vmem:[%s3 + $0x2d8] sm:$0xff] %v1256
    %1370 = vst [vmem:[%s3 + $0x2e0] sm:$0xff] %v1257
    %1371 = vst [vmem:[%s3 + $0x2e8] sm:$0xff] %v1258
    %1372 = vst [vmem:[%s3 + $0x2f0] sm:$0xff] %v1259
    %1373 = vst [vmem:[%s3 + $0x2f8] sm:$0xff] %v1260
    %1374 = vst [vmem:[%s3 + $0x300] sm:$0xff] %v1261
    %1375 = vst.msk [vmem:[%s3 + $0x308] sm:$0xff] %vm1283, %v1262
    %1376 = vst [vmem:[%s3 + $0x310] sm:$0xff] %v1263
    %1377 = vst [vmem:[%s3 + $0x318] sm:$0xff] %v1264
    %1378 = vst [vmem:[%s3 + $0x320] sm:$0xff] %v1265
    %1379 = vst [vmem:[%s3 + $0x328] sm:$0xff] %v1266
    %1380 = vst [vmem:[%s3 + $0x330] sm:$0xff] %v1267
    %1381 = vst [vmem:[%s3 + $0x338] sm:$0xff] %v1268
    %1382 = vst.msk [vmem:[%s3 + $0x340] sm:$0xff] %vm1283, %v1269
    %1383 = vst [vmem:[%s3 + $0x348] sm:$0xff] %v1270
    %1384 = vst [vmem:[%s3 + $0x350] sm:$0xff] %v1271
    %1385 = vst [vmem:[%s3 + $0x358] sm:$0xff] %v1272
    %1386 = vst [vmem:[%s3 + $0x360] sm:$0xff] %v1273
    %1387 = vst [vmem:[%s3 + $0x368] sm:$0xff] %v1274
    %1388 = vst [vmem:[%s3 + $0x370] sm:$0xff] %v1275
    %1389 = vst.msk [vmem:[%s3 + $0x378] sm:$0xff] %vm1283, %v1276
    // Predicated region
    $region18: #{tpu_custom_call.1} parent=1 // pred_check
      _
    $region19: #{tpu_custom_call.1} parent=1 // pred_check_branch
      %1391 = sbr.rel (0) target = $region21
    $region20: #{tpu_custom_call.1} parent=1 // pred_region
      _
    $region21: #{tpu_custom_call.1} parent=1 // pred_fallthru
      _
    // Predicated region
    $region22: #{tpu_custom_call.1} parent=1 // pred_check
      _
    $region23: #{tpu_custom_call.1} parent=1 // pred_check_branch
      %1393 = sbr.rel (0) target = $region25
    $region24: #{tpu_custom_call.1} parent=1 // pred_region
      _
    $region25: #{tpu_custom_call.1} parent=1 // pred_fallthru
      _
    %1394 = vsyncpa [#allocation3], 1

</llo_original>
